<compile_context>
chip_gen: v5e
topology: v5e:2x2
jax: 0.10.0
libtpu: 0.0.40
codegen_flags: <defaults>
</compile_context>

<pallas_src>
import functools

import jax
import jax.numpy as jnp
from jax.experimental import pallas as pl
from jax.experimental.pallas import tpu as pltpu


def _integration_graph_kernel(a_ref, x_ref, w1_ref, w2_ref, shift_ref, out_ref):
    # One grid step handles a (Mt, T*C) lane-dense slab, Mt = batch_tile * J.
    X = x_ref[...]                                   # (Mt, T*C)   bf16
    A = a_ref[...]                                   # (Mt, Mt)    bf16, I_Bt (x) A

    # Stage 1 (fused, per-frame block-diagonal): X @ kron(I_T, [W_loc | W_g1]).
    h = jnp.dot(X, w1_ref[...], preferred_element_type=jnp.float32)   # (Mt, T*(C+C//4))

    # Joint aggregation for both branches: one tiny bf16 MXU pass + ReLU.
    g = jnp.dot(A, h.astype(jnp.bfloat16), preferred_element_type=jnp.float32)
    g = jnp.maximum(g, 0.0)

    # Residual path + stage-2 fused into a single GEMM on the lane-aligned concat
    # [X | g] (X is exactly T*C = lane-group aligned, so the concat is free).
    xg = jnp.concatenate([X, g.astype(jnp.bfloat16)], axis=-1)         # (Mt, T*C + T*(C+C//4))
    y = jnp.dot(xg, w2_ref[...], preferred_element_type=jnp.float32)   # (Mt, T*C)

    # Folded eval-mode BatchNorm shift + final ReLU; full-width lane-dense store.
    y = y + shift_ref[...]
    out_ref[...] = jnp.maximum(y, 0.0).astype(out_ref.dtype)


def _choose_num_batch_tiles(batch, joints):
    """1 fat step on single-TC chips (v5e/v6e); split only where a 2nd TC exists."""
    tiles = 1
    try:
        kind = jax.devices()[0].device_kind.lower()
        two_tensorcores = "v7" in kind
    except Exception:  # CPU / interpret fallback
        two_tensorcores = False
    if two_tensorcores and batch % 2 == 0 and ((batch // 2) * joints) % 8 == 0:
        tiles = 2
    # VMEM guard for scaled-up configs: cap per-step rows, keep blocks 8-aligned.
    while ((batch // tiles) * joints > 512
           and batch % (tiles * 2) == 0
           and ((batch // (tiles * 2)) * joints) % 8 == 0):
        tiles *= 2
    return tiles


def prepare_aggregator(adj, batch, joints):
    """Pick the batch tiling and pre-build the per-step aggregation matrix (bf16).

    A_tile = I_Bt (x) A — quadratic only in Bt*J (no (x) I_T blow-up) and built ONCE
    outside the jitted forward, so no per-call kron / HBM round-trip.
    """
    num_tiles = _choose_num_batch_tiles(batch, joints)
    bt = batch // num_tiles
    a_tile = jnp.kron(jnp.eye(bt, dtype=jnp.float32),
                      adj.astype(jnp.float32)).astype(jnp.bfloat16)
    return a_tile, num_tiles


@functools.partial(jax.jit, static_argnames=("num_tiles",))
def integration_graph_forward(x, a_tile, params, num_tiles):
    """x: (B, J, T, C) channel-last. Returns (B, J*T, C) bf16 == module's x.view(b, -1, t)."""
    B, J, T, C = x.shape
    Mt = (B // num_tiles) * J          # rows per grid step
    lanes = T * C                      # lane-dense width (input / output)
    mid = T * (C + C // 4)             # lane-dense width of the fused stage-1 output

    # Pure row-major reshape (NO transpose / HBM relayout); bf16 halves DMA bytes.
    x2 = x.reshape(B * J, lanes).astype(jnp.bfloat16)

    out = pl.pallas_call(
        _integration_graph_kernel,
        out_shape=jax.ShapeDtypeStruct((B * J, lanes), jnp.bfloat16),
        grid_spec=pltpu.PrefetchScalarGridSpec(
            num_scalar_prefetch=0,
            grid=(num_tiles,),
            in_specs=[
                pl.BlockSpec((Mt, Mt), lambda i: (0, 0)),              # I_Bt (x) A (resident)
                pl.BlockSpec((Mt, lanes), lambda i: (i, 0)),           # x slab
                pl.BlockSpec((lanes, mid), lambda i: (0, 0)),          # w1 block-diag
                pl.BlockSpec((lanes + mid, lanes), lambda i: (0, 0)),  # fused [res; stage2]
                pl.BlockSpec((1, lanes), lambda i: (0, 0)),            # bn shift (tiled / T)
            ],
            out_specs=pl.BlockSpec((Mt, lanes), lambda i: (i, 0)),
        ),
        compiler_params=pltpu.CompilerParams(
            dimension_semantics=("parallel",)),
    )(a_tile, x2, params["w1_block"], params["w2_fused"], params["bn_shift_lane"])

    # Free reshape: (B*J, T*C) -> (B, J*T, C), matching x.view(b, -1, t) with t == C.
    return out.reshape(B, J * T, C)


def build_skeleton_adj(num_joints):
    """Normalized adjacency D^-1/2 (A+I) D^-1/2 for a simple chain skeleton,
    standing in for graph_utils.adj_mx_from_skeleton()."""
    A = jnp.zeros((num_joints, num_joints), jnp.float32)
    idx = jnp.arange(num_joints - 1)
    A = A.at[idx, idx + 1].set(1.0)
    A = A.at[idx + 1, idx].set(1.0)
    A = A + jnp.eye(num_joints, dtype=jnp.float32)
    d = jnp.sum(A, axis=1)
    d_inv_sqrt = 1.0 / jnp.sqrt(d)
    return A * d_inv_sqrt[:, None] * d_inv_sqrt[None, :]


def init_params(key, input_dim, output_dim, seq_len):
    assert input_dim == output_dim, "residual concat requires input_dim == output_dim"
    C = input_dim
    T = seq_len
    k_loc, k_g1, k_g2, k_cat = jax.random.split(key, 4)
    scale = 1.0 / jnp.sqrt(jnp.float32(C))

    # Base (module-equivalent) weights.
    w_loc = jax.random.normal(k_loc, (C, C), jnp.float32) * scale          # LocalPart
    w_g1 = jax.random.normal(k_g1, (C, C // 4), jnp.float32) * scale       # Global 1
    w_g2 = jax.random.normal(k_g2, (C // 4, C), jnp.float32) * scale       # Global 2
    # 1x1 Conv2d(3C, C, bias=False): weight (C, 3C, 1, 1) expressed as (3C, C) = W.T,
    # row blocks ordered [residual; local; global] to match torch.cat((residual,x_,y_)).
    w_cat = (jax.random.normal(k_cat, (3 * C, C), jnp.float32)
             * (1.0 / jnp.sqrt(jnp.float32(3 * C))))

    # BatchNorm2d(C) fresh init (eval mode): gamma=1, beta=0, mean=0, var=1, eps=1e-5.
    eps = 1e-5
    gamma = jnp.ones((C,), jnp.float32)
    beta = jnp.zeros((C,), jnp.float32)
    running_mean = jnp.zeros((C,), jnp.float32)
    running_var = jnp.ones((C,), jnp.float32)
    bn_scale = gamma / jnp.sqrt(running_var + eps)                         # (C,)
    bn_shift = beta - running_mean * bn_scale                              # (C,)

    # ---- Fold & fuse (exact algebraic rewrites of the forward pass) ----
    w_res_cat = w_cat[0 * C:1 * C] * bn_scale[None, :]   # residual block, BN scale folded
    w_loc_cat = w_cat[1 * C:2 * C] * bn_scale[None, :]   # local block,   BN scale folded
    w_glb_cat = w_cat[2 * C:3 * C] * bn_scale[None, :]   # global block,  BN scale folded

    w_stage1 = jnp.concatenate([w_loc, w_g1], axis=1)                      # (C, C+C//4)
    w_stage2 = jnp.concatenate([w_loc_cat, jnp.dot(w_g2, w_glb_cat)],      # (C+C//4, C)
                               axis=0)

    # Lane-dense (per-frame block-diagonal) forms consumed by the kernel.
    eye_t = jnp.eye(T, dtype=jnp.float32)
    w1_block = jnp.kron(eye_t, w_stage1)                                   # (T*C, T*(C+C//4))
    w2_block = jnp.kron(eye_t, w_stage2)                                   # (T*(C+C//4), T*C)
    wres_block = jnp.kron(eye_t, w_res_cat)                                # (T*C, T*C)
    # Row order must match the kernel's [X | g] lane-concat: residual rows first.
    w2_fused = jnp.concatenate([wres_block, w2_block], axis=0)             # (T*C + T*(C+C//4), T*C)

    bn_shift_lane = jnp.tile(bn_shift, (T,)).reshape(1, T * C)             # (1, T*C)

    return {
        "w1_block": w1_block.astype(jnp.bfloat16),
        "w2_fused": w2_fused.astype(jnp.bfloat16),
        "bn_shift_lane": bn_shift_lane.astype(jnp.float32),
    }


if __name__ == "__main__":
    B, J, T, C = 2, 16, 4, 32   # input_dim = output_dim = 32 (t == C in the module)
    key = jax.random.PRNGKey(0)
    k_x, k_p = jax.random.split(key)

    x = jax.random.normal(k_x, (B, J, T, C), jnp.float32)
    adj = build_skeleton_adj(J)
    params = init_params(k_p, C, C, T)

    a_tile, num_tiles = prepare_aggregator(adj, B, J)
    out = integration_graph_forward(x, a_tile, params, num_tiles=num_tiles)
    jax.block_until_ready(out)

    assert out.shape == (B, J * T, C), out.shape
    assert bool(jnp.all(jnp.isfinite(out.astype(jnp.float32))))
    print("KERNEL_OK")
</pallas_src>

<mosaic_0001>
module attributes {stable_mosaic.version = 11 : i64} {
  func.func @_integration_graph_kernel(%arg0: i32, %arg1: memref<32x32xbf16, #tpu.memory_space<vmem>>, %arg2: memref<32x128xbf16, #tpu.memory_space<vmem>>, %arg3: memref<128x160xbf16, #tpu.memory_space<vmem>>, %arg4: memref<288x128xbf16, #tpu.memory_space<vmem>>, %arg5: memref<1x128xf32, #tpu.memory_space<vmem>>, %arg6: memref<32x128xbf16, #tpu.memory_space<vmem>>) attributes {dimension_semantics = [#tpu.dimension_semantics<parallel>], iteration_bounds = array<i64: 1>, scalar_prefetch = 0 : i64, scratch_operands = 0 : i64, tpu.core_type = #tpu.core_type<tc>, window_params = [{pipeline_mode = #tpu.pipeline_mode<synchronous>, transform_indices = @transform_0, window_bounds = array<i64: 32, 32>}, {transform_indices = @transform_1, window_bounds = array<i64: 32, 128>}, {pipeline_mode = #tpu.pipeline_mode<synchronous>, transform_indices = @transform_2, window_bounds = array<i64: 128, 160>}, {pipeline_mode = #tpu.pipeline_mode<synchronous>, transform_indices = @transform_3, window_bounds = array<i64: 288, 128>}, {pipeline_mode = #tpu.pipeline_mode<synchronous>, transform_indices = @transform_4, window_bounds = array<i64: 1, 128>}, {transform_indices = @transform_5, window_bounds = array<i64: 32, 128>}]} {
    %c0 = arith.constant 0 : index
    %c0_0 = arith.constant 0 : index
    %0 = vector.load %arg2[%c0, %c0_0] : memref<32x128xbf16, #tpu.memory_space<vmem>>, vector<32x128xbf16>
    %c0_1 = arith.constant 0 : index
    %c0_2 = arith.constant 0 : index
    %1 = vector.load %arg1[%c0_1, %c0_2] : memref<32x32xbf16, #tpu.memory_space<vmem>>, vector<32x32xbf16>
    %c0_3 = arith.constant 0 : index
    %c0_4 = arith.constant 0 : index
    %2 = vector.load %arg3[%c0_3, %c0_4] : memref<128x160xbf16, #tpu.memory_space<vmem>>, vector<128x160xbf16>
    %cst = arith.constant dense<0.000000e+00> : vector<32x160xf32>
    %3 = tpu.matmul %0, %2, %cst {dimension_numbers = #tpu.dot_dimension_numbers<[1], [0], [0], [1], [0, 0, 1, 1], [], []>} : vector<32x128xbf16>, vector<128x160xbf16>, vector<32x160xf32> -> vector<32x160xf32>
    %4 = arith.truncf %3 : vector<32x160xf32> to vector<32x160xbf16>
    %cst_5 = arith.constant dense<0.000000e+00> : vector<32x160xf32>
    %5 = tpu.matmul %1, %4, %cst_5 {dimension_numbers = #tpu.dot_dimension_numbers<[1], [0], [0], [1], [0, 0, 1, 1], [], []>} : vector<32x32xbf16>, vector<32x160xbf16>, vector<32x160xf32> -> vector<32x160xf32>
    %cst_6 = arith.constant 0.000000e+00 : f32
    %6 = vector.broadcast %cst_6 : f32 to vector<32x160xf32>
    %7 = arith.maximumf %5, %6 : vector<32x160xf32>
    %8 = arith.truncf %7 : vector<32x160xf32> to vector<32x160xbf16>
    %9 = tpu.concatenate %0, %8 in 1 : vector<32x128xbf16>, vector<32x160xbf16> -> vector<32x288xbf16>
    %c0_7 = arith.constant 0 : index
    %c0_8 = arith.constant 0 : index
    %10 = vector.load %arg4[%c0_7, %c0_8] : memref<288x128xbf16, #tpu.memory_space<vmem>>, vector<288x128xbf16>
    %cst_9 = arith.constant dense<0.000000e+00> : vector<32x128xf32>
    %11 = tpu.matmul %9, %10, %cst_9 {dimension_numbers = #tpu.dot_dimension_numbers<[1], [0], [0], [1], [0, 0, 1, 1], [], []>} : vector<32x288xbf16>, vector<288x128xbf16>, vector<32x128xf32> -> vector<32x128xf32>
    %c0_10 = arith.constant 0 : index
    %c0_11 = arith.constant 0 : index
    %12 = vector.load %arg5[%c0_10, %c0_11] : memref<1x128xf32, #tpu.memory_space<vmem>>, vector<1x128xf32>
    %13 = vector.broadcast %12 : vector<1x128xf32> to vector<32x128xf32>
    %14 = arith.addf %11, %13 : vector<32x128xf32>
    %cst_12 = arith.constant 0.000000e+00 : f32
    %15 = vector.broadcast %cst_12 : f32 to vector<32x128xf32>
    %16 = arith.maximumf %14, %15 : vector<32x128xf32>
    %17 = arith.truncf %16 : vector<32x128xf32> to vector<32x128xbf16>
    %c0_13 = arith.constant 0 : index
    %c0_14 = arith.constant 0 : index
    %18 = vector.load %arg6[%c0_13, %c0_14] : memref<32x128xbf16, #tpu.memory_space<vmem>>, vector<32x128xbf16>
    tpu.vector_store %arg6[%c0_13, %c0_14], %17 {strides = array<i32>} : memref<32x128xbf16, #tpu.memory_space<vmem>>, vector<32x128xbf16>,
    return
  }
  func.func @transform_0(%arg0: i32) -> (i32, i32) {
    %c0_i32 = arith.constant 0 : i32
    %c0_i32_0 = arith.constant 0 : i32
    %c0_i32_1 = arith.constant 0 : i32
    return %c0_i32, %c0_i32_0 : i32, i32
  }
  func.func @transform_1(%arg0: i32) -> (i32, i32) {
    %c0_i32 = arith.constant 0 : i32
    %c0_i32_0 = arith.constant 0 : i32
    return %arg0, %c0_i32 : i32, i32
  }
  func.func @transform_2(%arg0: i32) -> (i32, i32) {
    %c0_i32 = arith.constant 0 : i32
    %c0_i32_0 = arith.constant 0 : i32
    %c0_i32_1 = arith.constant 0 : i32
    return %c0_i32, %c0_i32_0 : i32, i32
  }
  func.func @transform_3(%arg0: i32) -> (i32, i32) {
    %c0_i32 = arith.constant 0 : i32
    %c0_i32_0 = arith.constant 0 : i32
    %c0_i32_1 = arith.constant 0 : i32
    return %c0_i32, %c0_i32_0 : i32, i32
  }
  func.func @transform_4(%arg0: i32) -> (i32, i32) {
    %c0_i32 = arith.constant 0 : i32
    %c0_i32_0 = arith.constant 0 : i32
    %c0_i32_1 = arith.constant 0 : i32
    return %c0_i32, %c0_i32_0 : i32, i32
  }
  func.func @transform_5(%arg0: i32) -> (i32, i32) {
    %c0_i32 = arith.constant 0 : i32
    %c0_i32_0 = arith.constant 0 : i32
    return %arg0, %c0_i32 : i32, i32
  }
}

</mosaic_0001>

<llo_original>
// kernel: integration_graph_forward.1
$region0: #{integration_graph_forward.1}
  #allocation0 [shape = 'u32[]', space=smem, size = 0x4, offset = 0x4, fixed_abs, tag = 'smem constant byte address 0x4 - core index']
  #allocation1 [shape = 'u32[72,128]{1,0:T(1,128)}', space=vmem, size = 0x9000, scoped, tag = 'internal scratch']
  %s0 = inlined_call_operand.vmem [shape: bf16[32,32], index: 0, kind: input, shape index: {}]
  %s1 = inlined_call_operand.vmem [shape: bf16[32,128], index: 1, kind: input, shape index: {}]
  %s2 = inlined_call_operand.vmem [shape: bf16[128,160], index: 2, kind: input, shape index: {}]
  %s3 = inlined_call_operand.vmem [shape: bf16[288,128], index: 3, kind: input, shape index: {}]
  %s4 = inlined_call_operand.vmem [shape: f32[1,128], index: 4, kind: input, shape index: {}]
  %s5 = inlined_call_operand.vmem [shape: bf16[32,128], index: 5, kind: output, shape index: {}]
  %s6 = sld [smem:[#allocation0]]
  $region30: #{integration_graph_forward.1} parent=0
    _
  %s8 = ssub.s32 1, %s6
  %s9 = scalar_select 0, %s8, %s6
  // Predicated region
  $region2: #{integration_graph_forward.1} parent=0 // pred_check
    _
  $region3: #{integration_graph_forward.1} parent=0 // pred_check_branch
    %11 = sbr.rel (0) target = $region5
  $region4: #{integration_graph_forward.1} parent=0 // pred_region
    _
  $region5: #{integration_graph_forward.1} parent=0 // pred_fallthru
    _
  // Predicated region
  $region6: #{integration_graph_forward.1} parent=0 // pred_check
    _
  $region7: #{integration_graph_forward.1} parent=0 // pred_check_branch
    %13 = sbr.rel (0) target = $region9
  $region8: #{integration_graph_forward.1} parent=0 // pred_region
    _
  $region9: #{integration_graph_forward.1} parent=0 // pred_fallthru
    _
  // Predicated region
  $region10: #{integration_graph_forward.1} parent=0 // pred_check
    _
  $region11: #{integration_graph_forward.1} parent=0 // pred_check_branch
    %15 = sbr.rel (0) target = $region13
  $region12: #{integration_graph_forward.1} parent=0 // pred_region
    _
  $region13: #{integration_graph_forward.1} parent=0 // pred_fallthru
    _
  // Predicated region
  $region14: #{integration_graph_forward.1} parent=0 // pred_check
    _
  $region15: #{integration_graph_forward.1} parent=0 // pred_check_branch
    %17 = sbr.rel (0) target = $region17
  $region16: #{integration_graph_forward.1} parent=0 // pred_region
    _
  $region17: #{integration_graph_forward.1} parent=0 // pred_fallthru
    _
  // Predicated region
  $region18: #{integration_graph_forward.1} parent=0 // pred_check
    _
  $region19: #{integration_graph_forward.1} parent=0 // pred_check_branch
    %19 = sbr.rel (0) target = $region21
  $region20: #{integration_graph_forward.1} parent=0 // pred_region
    _
  $region21: #{integration_graph_forward.1} parent=0 // pred_fallthru
    _
  %v21 = vld [vmem:[%s1] sm:$0xf]
  %v22 = vld [vmem:[%s1 + $0x4] sm:$0xf]
  %v23 = vld [vmem:[%s1 + $0x8] sm:$0xf]
  %v24 = vld [vmem:[%s1 + $0xc] sm:$0xf]
  %v25 = vld [vmem:[%s0] sm:$0xf]
  %v26 = vld [vmem:[%s0 + $0x4] sm:$0xf]
  %v27 = vld [vmem:[%s0 + $0x8] sm:$0xf]
  %v28 = vld [vmem:[%s0 + $0xc] sm:$0xf]
  %v29 = vld [vmem:[%s2] sm:$0xff]
  %v30 = vld [vmem:[%s2 + $0x8] sm:$0xff]
  %v31 = vld [vmem:[%s2 + $0x10] sm:$0xff]
  %v32 = vld [vmem:[%s2 + $0x18] sm:$0xff]
  %v33 = vld [vmem:[%s2 + $0x20] sm:$0xff]
  %v34 = vld [vmem:[%s2 + $0x28] sm:$0xff]
  %v35 = vld [vmem:[%s2 + $0x30] sm:$0xff]
  %v36 = vld [vmem:[%s2 + $0x38] sm:$0xff]
  %v37 = vld [vmem:[%s2 + $0x40] sm:$0xff]
  %v38 = vld [vmem:[%s2 + $0x48] sm:$0xff]
  %v39 = vld [vmem:[%s2 + $0x50] sm:$0xff]
  %v40 = vld [vmem:[%s2 + $0x58] sm:$0xff]
  %v41 = vld [vmem:[%s2 + $0x60] sm:$0xff]
  %v42 = vld [vmem:[%s2 + $0x68] sm:$0xff]
  %v43 = vld [vmem:[%s2 + $0x70] sm:$0xff]
  %v44 = vld [vmem:[%s2 + $0x78] sm:$0xff]
  %v49 = vunpack.c.l.b16 %v21
  %v50 = vunpack.c.l.b16 %v22
  %v51 = vunpack.c.l.b16 %v23
  %v52 = vunpack.c.l.b16 %v24
  %v53 = vpack.c.b16 %v50, %v49
  %v54 = vpack.c.b16 %v52, %v51
  %v73 = vunpack.c.l.b16 %v29
  %v74 = vunpack.c.h.b16 %v29
  %v75 = vunpack.c.l.b16 %v30
  %v76 = vunpack.c.h.b16 %v30
  %v77 = vunpack.c.l.b16 %v31
  %v78 = vunpack.c.h.b16 %v31
  %v79 = vunpack.c.l.b16 %v32
  %v80 = vunpack.c.h.b16 %v32
  %v81 = vunpack.c.l.b16 %v33
  %v82 = vunpack.c.h.b16 %v33
  %v83 = vunpack.c.l.b16 %v34
  %v84 = vunpack.c.h.b16 %v34
  %v85 = vunpack.c.l.b16 %v35
  %v86 = vunpack.c.h.b16 %v35
  %v87 = vunpack.c.l.b16 %v36
  %v88 = vunpack.c.h.b16 %v36
  %v89 = vunpack.c.l.b16 %v37
  %v90 = vunpack.c.h.b16 %v37
  %v91 = vunpack.c.l.b16 %v38
  %v92 = vunpack.c.h.b16 %v38
  %v93 = vunpack.c.l.b16 %v39
  %v94 = vunpack.c.h.b16 %v39
  %v95 = vunpack.c.l.b16 %v40
  %v96 = vunpack.c.h.b16 %v40
  %v97 = vunpack.c.l.b16 %v41
  %v98 = vunpack.c.h.b16 %v41
  %v99 = vunpack.c.l.b16 %v42
  %v100 = vunpack.c.h.b16 %v42
  %v101 = vunpack.c.l.b16 %v43
  %v102 = vunpack.c.h.b16 %v43
  %v103 = vunpack.c.l.b16 %v44
  %v104 = vunpack.c.h.b16 %v44
  %v105 = vpack.c.b16 %v75, %v73
  %v106 = vpack.c.b16 %v76, %v74
  %v107 = vpack.c.b16 %v79, %v77
  %v108 = vpack.c.b16 %v80, %v78
  %v109 = vpack.c.b16 %v83, %v81
  %v110 = vpack.c.b16 %v84, %v82
  %v111 = vpack.c.b16 %v87, %v85
  %v112 = vpack.c.b16 %v88, %v86
  %v113 = vpack.c.b16 %v91, %v89
  %v114 = vpack.c.b16 %v92, %v90
  %v115 = vpack.c.b16 %v95, %v93
  %v116 = vpack.c.b16 %v96, %v94
  %v117 = vpack.c.b16 %v99, %v97
  %v118 = vpack.c.b16 %v100, %v98
  %v119 = vpack.c.b16 %v103, %v101
  %v120 = vpack.c.b16 %v104, %v102
  %137 = vmatpush.bf16.msra.mxu0 %v119
  %138 = vmatpush.bf16.msra.mxu0 %v117
  %139 = vmatpush.bf16.msra.mxu0 %v115
  %140 = vmatpush.bf16.msra.mxu0 %v113
  %141 = vmatpush.bf16.msra.mxu0 %v111
  %142 = vmatpush.bf16.msra.mxu0 %v109
  %143 = vmatpush.bf16.msra.mxu0 %v107
  %144 = vmatpush.bf16.msra.mxu0 %v105
  %145 = vmatmul.bf16.gmra.mxu0 %v53
  %v146 = vpop.f32.mrf.mxu0
  %v147 = vadd.f32 0.0, %v146
  %v148 = vpop.f32.mrf.mxu0
  %v149 = vadd.f32 0.0, %v148
  %150 = vmatmul.bf16.gmra.mxu0 %v54
  %v151 = vpop.f32.mrf.mxu0
  %v152 = vadd.f32 0.0, %v151
  %v153 = vpop.f32.mrf.mxu0
  %v154 = vadd.f32 0.0, %v153
  %155 = vdwg.mxu0
  %156 = vmatpush.bf16.msra.mxu0 %v120
  %157 = vmatpush.bf16.msra.mxu0 %v118
  %158 = vmatpush.bf16.msra.mxu0 %v116
  %159 = vmatpush.bf16.msra.mxu0 %v114
  %160 = vmatpush.bf16.msra.mxu0 %v112
  %161 = vmatpush.bf16.msra.mxu0 %v110
  %162 = vmatpush.bf16.msra.mxu0 %v108
  %163 = vmatpush.bf16.msra.mxu0 %v106
  %164 = vmatmul.bf16.gmra.mxu0 %v53
  %v165 = vpop.f32.mrf.mxu0
  %v166 = vadd.f32 0.0, %v165
  %v167 = vpop.f32.mrf.mxu0
  %v168 = vadd.f32 0.0, %v167
  %169 = vmatmul.bf16.gmra.mxu0 %v54
  %v170 = vpop.f32.mrf.mxu0
  %v171 = vadd.f32 0.0, %v170
  %v172 = vpop.f32.mrf.mxu0
  %v173 = vadd.f32 0.0, %v172
  %174 = vdwg.mxu0
  %v175 = vpack.c.bf16 %v149, %v147
  %v176 = vpack.c.bf16 %v168, %v166
  %v177 = vpack.c.bf16 %v154, %v152
  %v178 = vpack.c.bf16 %v173, %v171
  %v183 = vunpack.c.l.b16 %v25
  %v184 = vunpack.c.l.b16 %v26
  %v185 = vunpack.c.l.b16 %v27
  %v186 = vunpack.c.l.b16 %v28
  %v187 = vpack.c.b16 %v184, %v183
  %v188 = vpack.c.b16 %v186, %v185
  %vm189 = vcmask 261120
  %v191 = vsel %vm189, %v187, 0
  %v194 = vsel %vm189, %v188, 0
  %196 = vmatpush.bf16.msra.mxu0 0
  %197 = vmatpush.bf16.msra.mxu0 0
  %198 = vmatpush.bf16.msra.mxu0 0
  %199 = vmatpush.bf16.msra.mxu0 0
  %200 = vmatpush.bf16.msra.mxu0 0
  %201 = vmatpush.bf16.msra.mxu0 0
  %202 = vmatpush.bf16.msra.mxu0 %v177
  %203 = vmatpush.bf16.msra.mxu0 %v175
  %204 = vmatmul.bf16.gmra.mxu0 %v191
  %v205 = vpop.f32.mrf.mxu0
  %v206 = vadd.f32 0.0, %v205
  %v207 = vpop.f32.mrf.mxu0
  %v208 = vadd.f32 0.0, %v207
  %209 = vmatmul.bf16.gmra.mxu0 %v194
  %v210 = vpop.f32.mrf.mxu0
  %v211 = vadd.f32 0.0, %v210
  %v212 = vpop.f32.mrf.mxu0
  %v213 = vadd.f32 0.0, %v212
  %214 = vdwg.mxu0
  %215 = vmatpush.bf16.msra.mxu0 0
  %216 = vmatpush.bf16.msra.mxu0 0
  %217 = vmatpush.bf16.msra.mxu0 0
  %218 = vmatpush.bf16.msra.mxu0 0
  %219 = vmatpush.bf16.msra.mxu0 0
  %220 = vmatpush.bf16.msra.mxu0 0
  %221 = vmatpush.bf16.msra.mxu0 %v178
  %222 = vmatpush.bf16.msra.mxu0 %v176
  %223 = vmatmul.bf16.gmra.mxu0 %v191
  %v224 = vpop.f32.mrf.mxu0
  %v225 = vadd.f32 0.0, %v224
  %v226 = vpop.f32.mrf.mxu0
  %v227 = vadd.f32 0.0, %v226
  %228 = vmatmul.bf16.gmra.mxu0 %v194
  %v229 = vpop.f32.mrf.mxu0
  %v230 = vadd.f32 0.0, %v229
  %v231 = vpop.f32.mrf.mxu0
  %v232 = vadd.f32 0.0, %v231
  %233 = vdwg.mxu0
  %v234 = vmax.f32 %v206, 0.0
  %v235 = vmax.f32 %v225, 0.0
  %v236 = vmax.f32 %v208, 0.0
  %v237 = vmax.f32 %v227, 0.0
  %v238 = vmax.f32 %v211, 0.0
  %v239 = vmax.f32 %v230, 0.0
  %v240 = vmax.f32 %v213, 0.0
  %v241 = vmax.f32 %v232, 0.0
  %v242 = vpack.c.bf16 %v235, %v234
  %v243 = vpack.c.bf16 %v237, %v236
  %v244 = vpack.c.bf16 %v239, %v238
  %v245 = vpack.c.bf16 %v241, %v240
  %v250 = vunpack.c.l.b16 %v242
  %v251 = vunpack.c.h.b16 %v242
  %v252 = vunpack.c.l.b16 %v243
  %v253 = vunpack.c.h.b16 %v243
  %v254 = vunpack.c.l.b16 %v244
  %v255 = vunpack.c.h.b16 %v244
  %v256 = vunpack.c.l.b16 %v245
  %v257 = vunpack.c.h.b16 %v245
  %v258 = vpack.c.b16 %v252, %v250
  %v259 = vpack.c.b16 %v253, %v251
  %v260 = vpack.c.b16 %v256, %v254
  %v261 = vpack.c.b16 %v257, %v255
  %v264 = vld [vmem:[%s3] sm:$0xf]
  %v265 = vld [vmem:[%s3 + $0x4] sm:$0xf]
  %v266 = vld [vmem:[%s3 + $0x8] sm:$0xf]
  %v267 = vld [vmem:[%s3 + $0xc] sm:$0xf]
  %v268 = vld [vmem:[%s3 + $0x10] sm:$0xf]
  %v269 = vld [vmem:[%s3 + $0x14] sm:$0xf]
  %v270 = vld [vmem:[%s3 + $0x18] sm:$0xf]
  %v271 = vld [vmem:[%s3 + $0x1c] sm:$0xf]
  %v272 = vld [vmem:[%s3 + $0x20] sm:$0xf]
  %v273 = vld [vmem:[%s3 + $0x24] sm:$0xf]
  %v274 = vld [vmem:[%s3 + $0x28] sm:$0xf]
  %v275 = vld [vmem:[%s3 + $0x2c] sm:$0xf]
  %v276 = vld [vmem:[%s3 + $0x30] sm:$0xf]
  %v277 = vld [vmem:[%s3 + $0x34] sm:$0xf]
  %v278 = vld [vmem:[%s3 + $0x38] sm:$0xf]
  %v279 = vld [vmem:[%s3 + $0x3c] sm:$0xf]
  %v280 = vld [vmem:[%s3 + $0x40] sm:$0xf]
  %v281 = vld [vmem:[%s3 + $0x44] sm:$0xf]
  %v282 = vld [vmem:[%s3 + $0x48] sm:$0xf]
  %v283 = vld [vmem:[%s3 + $0x4c] sm:$0xf]
  %v284 = vld [vmem:[%s3 + $0x50] sm:$0xf]
  %v285 = vld [vmem:[%s3 + $0x54] sm:$0xf]
  %v286 = vld [vmem:[%s3 + $0x58] sm:$0xf]
  %v287 = vld [vmem:[%s3 + $0x5c] sm:$0xf]
  %v288 = vld [vmem:[%s3 + $0x60] sm:$0xf]
  %v289 = vld [vmem:[%s3 + $0x64] sm:$0xf]
  %v290 = vld [vmem:[%s3 + $0x68] sm:$0xf]
  %v291 = vld [vmem:[%s3 + $0x6c] sm:$0xf]
  %v292 = vld [vmem:[%s3 + $0x70] sm:$0xf]
  %v293 = vld [vmem:[%s3 + $0x74] sm:$0xf]
  %v294 = vld [vmem:[%s3 + $0x78] sm:$0xf]
  %v295 = vld [vmem:[%s3 + $0x7c] sm:$0xf]
  %v296 = vld [vmem:[%s3 + $0x80] sm:$0xf]
  %v297 = vld [vmem:[%s3 + $0x84] sm:$0xf]
  %v298 = vld [vmem:[%s3 + $0x88] sm:$0xf]
  %v299 = vld [vmem:[%s3 + $0x8c] sm:$0xf]
  %v300 = vld [vmem:[%s4] sm:$0x1]
  %v302 = vperm.slane %v300, 0
  %v340 = vunpack.c.l.b16 %v264
  %v341 = vunpack.c.l.b16 %v265
  %v342 = vunpack.c.l.b16 %v266
  %v343 = vunpack.c.l.b16 %v267
  %v344 = vunpack.c.l.b16 %v268
  %v345 = vunpack.c.l.b16 %v269
  %v346 = vunpack.c.l.b16 %v270
  %v347 = vunpack.c.l.b16 %v271
  %v348 = vunpack.c.l.b16 %v272
  %v349 = vunpack.c.l.b16 %v273
  %v350 = vunpack.c.l.b16 %v274
  %v351 = vunpack.c.l.b16 %v275
  %v352 = vunpack.c.l.b16 %v276
  %v353 = vunpack.c.l.b16 %v277
  %v354 = vunpack.c.l.b16 %v278
  %v355 = vunpack.c.l.b16 %v279
  %v356 = vunpack.c.l.b16 %v280
  %v357 = vunpack.c.l.b16 %v281
  %v358 = vunpack.c.l.b16 %v282
  %v359 = vunpack.c.l.b16 %v283
  %v360 = vunpack.c.l.b16 %v284
  %v361 = vunpack.c.l.b16 %v285
  %v362 = vunpack.c.l.b16 %v286
  %v363 = vunpack.c.l.b16 %v287
  %v364 = vunpack.c.l.b16 %v288
  %v365 = vunpack.c.l.b16 %v289
  %v366 = vunpack.c.l.b16 %v290
  %v367 = vunpack.c.l.b16 %v291
  %v368 = vunpack.c.l.b16 %v292
  %v369 = vunpack.c.l.b16 %v293
  %v370 = vunpack.c.l.b16 %v294
  %v371 = vunpack.c.l.b16 %v295
  %v372 = vunpack.c.l.b16 %v296
  %v373 = vunpack.c.l.b16 %v297
  %v374 = vunpack.c.l.b16 %v298
  %v375 = vunpack.c.l.b16 %v299
  %v376 = vpack.c.b16 %v341, %v340
  %v377 = vpack.c.b16 %v343, %v342
  %v378 = vpack.c.b16 %v345, %v344
  %v379 = vpack.c.b16 %v347, %v346
  %v380 = vpack.c.b16 %v349, %v348
  %v381 = vpack.c.b16 %v351, %v350
  %v382 = vpack.c.b16 %v353, %v352
  %v383 = vpack.c.b16 %v355, %v354
  %v384 = vpack.c.b16 %v357, %v356
  %v385 = vpack.c.b16 %v359, %v358
  %v386 = vpack.c.b16 %v361, %v360
  %v387 = vpack.c.b16 %v363, %v362
  %v388 = vpack.c.b16 %v365, %v364
  %v389 = vpack.c.b16 %v367, %v366
  %v390 = vpack.c.b16 %v369, %v368
  %v391 = vpack.c.b16 %v371, %v370
  %v392 = vpack.c.b16 %v373, %v372
  %v393 = vpack.c.b16 %v375, %v374
  %v413 = vsel %vm189, %v259, 0
  %v416 = vsel %vm189, %v261, 0
  %418 = vmatpush.bf16.msra.mxu0 %v383
  %419 = vmatpush.bf16.msra.mxu0 %v382
  %420 = vmatpush.bf16.msra.mxu0 %v381
  %421 = vmatpush.bf16.msra.mxu0 %v380
  %422 = vmatpush.bf16.msra.mxu0 %v379
  %423 = vmatpush.bf16.msra.mxu0 %v378
  %424 = vmatpush.bf16.msra.mxu0 %v377
  %425 = vmatpush.bf16.msra.mxu0 %v376
  %426 = vmatmul.bf16.gmra.mxu0 %v53
  %v427 = vpop.f32.mrf.mxu0
  %v428 = vadd.f32 %v302, %v427
  %v429 = vpop.f32.mrf.mxu0
  %v430 = vadd.f32 %v302, %v429
  %431 = vmatmul.bf16.gmra.mxu0 %v54
  %v432 = vpop.f32.mrf.mxu0
  %v433 = vadd.f32 %v302, %v432
  %v434 = vpop.f32.mrf.mxu0
  %v435 = vadd.f32 %v302, %v434
  %436 = vdwg.mxu0
  %437 = vmatpush.bf16.msra.mxu0 %v391
  %438 = vmatpush.bf16.msra.mxu0 %v390
  %439 = vmatpush.bf16.msra.mxu0 %v389
  %440 = vmatpush.bf16.msra.mxu0 %v388
  %441 = vmatpush.bf16.msra.mxu0 %v387
  %442 = vmatpush.bf16.msra.mxu0 %v386
  %443 = vmatpush.bf16.msra.mxu0 %v385
  %444 = vmatpush.bf16.msra.mxu0 %v384
  %445 = vmatmul.bf16.gmra.mxu0 %v258
  %v446 = vpop.f32.mrf.mxu0
  %v447 = vadd.f32 %v428, %v446
  %v448 = vpop.f32.mrf.mxu0
  %v449 = vadd.f32 %v430, %v448
  %450 = vmatmul.bf16.gmra.mxu0 %v260
  %v451 = vpop.f32.mrf.mxu0
  %v452 = vadd.f32 %v433, %v451
  %v453 = vpop.f32.mrf.mxu0
  %v454 = vadd.f32 %v435, %v453
  %455 = vdwg.mxu0
  %456 = vmatpush.bf16.msra.mxu0 0
  %457 = vmatpush.bf16.msra.mxu0 0
  %458 = vmatpush.bf16.msra.mxu0 0
  %459 = vmatpush.bf16.msra.mxu0 0
  %460 = vmatpush.bf16.msra.mxu0 0
  %461 = vmatpush.bf16.msra.mxu0 0
  %462 = vmatpush.bf16.msra.mxu0 %v393
  %463 = vmatpush.bf16.msra.mxu0 %v392
  %464 = vmatmul.bf16.gmra.mxu0 %v413
  %v465 = vpop.f32.mrf.mxu0
  %v466 = vadd.f32 %v447, %v465
  %v467 = vpop.f32.mrf.mxu0
  %v468 = vadd.f32 %v449, %v467
  %469 = vmatmul.bf16.gmra.mxu0 %v416
  %v470 = vpop.f32.mrf.mxu0
  %v471 = vadd.f32 %v452, %v470
  %v472 = vpop.f32.mrf.mxu0
  %v473 = vadd.f32 %v454, %v472
  %474 = vdwg.mxu0
  %v475 = vmax.f32 %v466, 0.0
  %v476 = vmax.f32 %v468, 0.0
  %v477 = vmax.f32 %v471, 0.0
  %v478 = vmax.f32 %v473, 0.0
  %v479 = vpack.c.bf16 %v475, %v475
  %v480 = vpack.c.bf16 %v476, %v476
  %v481 = vpack.c.bf16 %v477, %v477
  %v482 = vpack.c.bf16 %v478, %v478
  %483 = vst [vmem:[%s5] sm:$0xf] %v479
  %484 = vst [vmem:[%s5 + $0x4] sm:$0xf] %v480
  %485 = vst [vmem:[%s5 + $0x8] sm:$0xf] %v481
  %486 = vst [vmem:[%s5 + $0xc] sm:$0xf] %v482
  // Predicated region
  $region22: #{integration_graph_forward.1} parent=0 // pred_check
    _
  $region23: #{integration_graph_forward.1} parent=0 // pred_check_branch
    %488 = sbr.rel (0) target = $region25
  $region24: #{integration_graph_forward.1} parent=0 // pred_region
    _
  $region25: #{integration_graph_forward.1} parent=0 // pred_fallthru
    _
  // Predicated region
  $region26: #{integration_graph_forward.1} parent=0 // pred_check
    _
  $region27: #{integration_graph_forward.1} parent=0 // pred_check_branch
    %490 = sbr.rel (0) target = $region29
  $region28: #{integration_graph_forward.1} parent=0 // pred_region
    _
  $region29: #{integration_graph_forward.1} parent=0 // pred_fallthru
    _

</llo_original>
